<compile_context>
chip_gen: v6e
topology: v6e:2x2x1
jax: 0.10.0
libtpu: 0.0.40
codegen_flags: <defaults>
</compile_context>

<pallas_src>
import numpy as np
import jax
import jax.numpy as jnp
from jax import lax
from jax.experimental import pallas as pl
from jax.experimental.pallas import tpu as pltpu


# -----------------------------------------------------------------------------
# Kernel 1: tuned, normalised, transposed text embeddings.
#   grid = (num_c_tiles, num_prompts); the prompt axis (last, "arbitrary") is a
#   sequential reduction with resident accumulators.
#   Per (c_tile, p):
#     attn_scaled = attn / sum_s attn                      (recip on EUP)
#     acc        += sum_s embeds[c,s,:] * attn_scaled[c,s]  (bf16 stream, f32 acc)
#     wsum       += gattn[c,:] * recip(denom)               (tiny [Ct, Sn])
#   At p == P-1:
#     mean  = (acc + sum_j masked_pert[c,j,:] * wsum[c,j]) / P
#     text  = mean @ W_text                                  (f32 MXU, once)
#     out   = normalize(text).T  -> bf16 [De, Ct]            (lane-dense, resident
#                                                             operand for kernel 2)
# -----------------------------------------------------------------------------
def _text_embeds_kernel(pert_ref,     # VMEM [Ct, Sn, Dw] f32 (mask pre-applied)
                        embeds_ref,   # VMEM [Ct, S, Dw]  bf16 (prompt p)
                        attn_ref,     # VMEM [Ct, S]      bf16 (prompt p)
                        gattn_ref,    # VMEM [Ct, Sn]     f32  (attn @ name slots)
                        w_ref,        # VMEM [Dw, De]     f32
                        out_ref,      # VMEM [De, Ct]     bf16 (normalized text^T)
                        acc_ref,      # VMEM scratch [Ct, Dw] f32
                        wsum_ref):    # VMEM scratch [Ct, Sn] f32
    p = pl.program_id(1)
    num_p = pl.num_programs(1)

    @pl.when(p == 0)
    def _():
        acc_ref[...] = jnp.zeros_like(acc_ref)
        wsum_ref[...] = jnp.zeros_like(wsum_ref)

    attn = attn_ref[...].astype(jnp.float32)                        # [Ct, S]
    denom = jnp.maximum(jnp.sum(attn, axis=-1, keepdims=True), 1e-6)
    inv = pl.reciprocal(denom, approx=True)                         # [Ct, 1], EUP
    attn_scaled = attn * inv                                        # [Ct, S]

    # masked-mean contribution of the unperturbed prompt embeddings
    embeds = embeds_ref[...].astype(jnp.float32)                    # [Ct, S, Dw]
    acc_ref[...] += jnp.sum(embeds * attn_scaled[:, :, None], axis=1)

    # perturbation pooling weights only; the [Ct,Sn,Dw] pass is deferred
    wsum_ref[...] += gattn_ref[...] * inv                           # [Ct, Sn]

    @pl.when(p == num_p - 1)
    def _():
        contrib = jnp.sum(pert_ref[...] * wsum_ref[...][:, :, None], axis=1)
        mean_pooled = (acc_ref[...] + contrib) * (1.0 / num_p)      # [Ct, Dw] f32

        # project (f32, once per class tile) directly into [De, Ct] layout
        text_t = lax.dot_general(w_ref[...], mean_pooled,
                                 (((0,), (1,)), ((), ())),
                                 preferred_element_type=jnp.float32)  # [De, Ct]

        inv_norm = lax.rsqrt(
            jnp.maximum(jnp.sum(text_t * text_t, axis=0, keepdims=True), 1e-24))
        out_ref[...] = (text_t * inv_norm).astype(jnp.bfloat16)


# -----------------------------------------------------------------------------
# Kernel 2: cosine-similarity logits (tiled over N).
#   logits = (logit_scale * normalize(vid)) @ text_norm_T
#   (text is already normalized / transposed / bf16 from kernel 1)
# -----------------------------------------------------------------------------
def _logits_kernel(vid_ref,        # VMEM [Nt, De] f32
                   txt_ref,        # VMEM [De, C]  bf16 (resident across N tiles)
                   scale_ref,      # SMEM [1] f32
                   out_ref):       # VMEM [Nt, C] f32 (lane-dense in C)
    vid = vid_ref[...]
    scale = scale_ref[0]
    vid_inv = lax.rsqrt(jnp.maximum(jnp.sum(vid * vid, axis=-1, keepdims=True),
                                    1e-24))
    vidn = (vid * (scale * vid_inv)).astype(jnp.bfloat16)   # fold logit_scale in
    out_ref[...] = jnp.dot(vidn, txt_ref[...],
                           preferred_element_type=jnp.float32)


# -----------------------------------------------------------------------------
# Wrappers
# -----------------------------------------------------------------------------
def tuned_text_embeds(name_perturbation, name_token_mask,
                      prompt_name_input_embeds, prompt_name_attn_masks,
                      pre_name_offsets, w_text):
    P, C, S, Dw = prompt_name_input_embeds.shape
    Sn = name_perturbation.shape[1]
    De = w_text.shape[1]

    # prompt-invariant: compute once, outside the prompt loop
    masked_pert = (name_perturbation *
                   name_token_mask[:, :, None]).astype(jnp.float32)

    # stream the dominant tensors as bf16 (mask values 0/1 are exact in bf16)
    embeds_bf16 = prompt_name_input_embeds.astype(jnp.bfloat16)
    attn_bf16 = prompt_name_attn_masks.astype(jnp.bfloat16)

    # pre-gather attn at the name positions: gattn[p, c, j] = attn[p, c, off_p + j]
    # (tiny [P, C, Sn] one-time gather; assumes off_p + Sn <= S as in the module)
    gattn = jax.vmap(
        lambda a, off: lax.dynamic_slice_in_dim(a, off, Sn, axis=1)
    )(prompt_name_attn_masks.astype(jnp.float32), pre_name_offsets)   # [P, C, Sn]

    w_f32 = w_text.astype(jnp.float32)

    # --- class-tile heuristic ------------------------------------------------
    # Keep the double-buffered bf16 embeds block within a conservative budget
    # (fits v7x's 64 MiB VMEM; v5e/v6e have headroom) and prefer >= 2 tiles at
    # large C so the "parallel" class axis can shard across both v7x cores.
    embeds_row_bytes = S * Dw * 2                 # bf16 bytes per class
    budget = 8 * 1024 * 1024                      # per pipeline buffer
    c_tile = min(256, max(8, budget // max(embeds_row_bytes, 1)))
    c_tile = (c_tile // 8) * 8
    if C <= c_tile:
        c_tile = C
    num_c = pl.cdiv(C, c_tile)

    grid_spec = pltpu.PrefetchScalarGridSpec(
        num_scalar_prefetch=0,
        grid=(num_c, P),
        in_specs=[
            pl.BlockSpec((c_tile, Sn, Dw), lambda c, p: (c, 0, 0)),        # pert
            pl.BlockSpec((None, c_tile, S, Dw), lambda c, p: (p, c, 0, 0)),  # embeds
            pl.BlockSpec((None, c_tile, S), lambda c, p: (p, c, 0)),       # attn
            pl.BlockSpec((None, c_tile, Sn), lambda c, p: (p, c, 0)),      # gattn
            pl.BlockSpec((Dw, De), lambda c, p: (0, 0)),                   # W_text
        ],
        out_specs=pl.BlockSpec((De, c_tile), lambda c, p: (0, c)),
        scratch_shapes=[pltpu.VMEM((c_tile, Dw), jnp.float32),
                        pltpu.VMEM((c_tile, Sn), jnp.float32)],
    )

    return pl.pallas_call(
        _text_embeds_kernel,
        out_shape=jax.ShapeDtypeStruct((De, C), jnp.bfloat16),
        grid_spec=grid_spec,
        compiler_params=pltpu.CompilerParams(
            dimension_semantics=("parallel", "arbitrary"),
            # c_tile budget above is the real lever; 48 MiB is safe on all
            # generations (raise toward ~96 MiB on v5e/v6e for bigger tiles).
            vmem_limit_bytes=48 * 1024 * 1024),
    )(masked_pert, embeds_bf16, attn_bf16, gattn, w_f32)


def cosine_logits(vid_embeds, text_embeds_t, logit_scale):
    N, De = vid_embeds.shape
    C = text_embeds_t.shape[1]
    n_tile = N if N <= 256 else 256

    return pl.pallas_call(
        _logits_kernel,
        out_shape=jax.ShapeDtypeStruct((N, C), jnp.float32),
        grid=(pl.cdiv(N, n_tile),),
        in_specs=[
            pl.BlockSpec((n_tile, De), lambda n: (n, 0)),
            pl.BlockSpec((De, C), lambda n: (0, 0)),      # resident bf16 text
            pl.BlockSpec(memory_space=pltpu.MemorySpace.SMEM),
        ],
        out_specs=pl.BlockSpec((n_tile, C), lambda n: (n, 0)),
        compiler_params=pltpu.CompilerParams(
            dimension_semantics=("parallel",),
            vmem_limit_bytes=48 * 1024 * 1024),
    )(vid_embeds, text_embeds_t, logit_scale)


def name_tuning_forward(vid_embeds, name_perturbation, name_token_mask,
                        prompt_name_input_embeds, prompt_name_attn_masks,
                        pre_name_offsets, w_text, logit_scale):
    text_t = tuned_text_embeds(
        name_perturbation, name_token_mask, prompt_name_input_embeds,
        prompt_name_attn_masks, pre_name_offsets, w_text)
    return cosine_logits(vid_embeds, text_t, logit_scale)


# -----------------------------------------------------------------------------
# Pure-JAX reference (same synthetic encoder, full f32) for correctness.
# -----------------------------------------------------------------------------
def reference_forward(vid_embeds, name_perturbation, name_token_mask,
                      prompt_name_input_embeds, prompt_name_attn_masks,
                      pre_name_offsets, w_text, logit_scale):
    P, C, S, Dw = prompt_name_input_embeds.shape
    Sn = name_perturbation.shape[1]
    masked_pert = name_perturbation * name_token_mask[:, :, None]
    acc = jnp.zeros((C, w_text.shape[1]), jnp.float32)
    for p in range(P):
        off = int(pre_name_offsets[p])
        x = prompt_name_input_embeds[p]
        x = x.at[:, off:off + Sn, :].add(masked_pert)
        attn = prompt_name_attn_masks[p]
        pooled = (x * attn[:, :, None]).sum(1) / attn.sum(1, keepdims=True)
        acc = acc + pooled @ w_text
    text = acc / P
    v = vid_embeds / jnp.maximum(
        jnp.linalg.norm(vid_embeds, axis=1, keepdims=True), 1e-12)
    t = text / jnp.maximum(jnp.linalg.norm(text, axis=1, keepdims=True), 1e-12)
    return logit_scale[0] * (v @ t.T)


if __name__ == "__main__":
    # P prompts, C classes, seq S, name seq Sn, word dim Dw, embed dim De,
    # N videos.
    P, C, S, Sn, Dw, De, N = 2, 4, 16, 8, 32, 32, 2

    key = jax.random.PRNGKey(0)
    k1, k2, k3, k4 = jax.random.split(key, 4)

    prompt_name_input_embeds = jax.random.normal(k1, (P, C, S, Dw), jnp.float32)

    # per-(prompt, class) valid lengths -> attention masks
    lens = jnp.array([[10, 12, 14, 16],
                      [9, 11, 13, 15]], jnp.int32)                     # [P, C]
    prompt_name_attn_masks = (
        jnp.arange(S)[None, None, :] < lens[:, :, None]).astype(jnp.float32)

    # learned perturbation parameter (zeros at init in torch; random here so
    # the perturbation path is actually exercised)
    name_perturbation = 0.1 * jax.random.normal(k2, (C, Sn, Dw), jnp.float32)

    # name token mask (True only for real name tokens)
    name_lens = jnp.array([3, 5, 2, 6], jnp.int32)
    name_token_mask = (
        jnp.arange(Sn)[None, :] < name_lens[:, None]).astype(jnp.float32)

    # pre_name_template_lengths (offset of the name inside each prompt)
    pre_name_offsets = jnp.array([2, 5], jnp.int32)

    # synthetic text-encoder projection + CLIP-style logit scale
    w_text = jax.random.normal(k3, (Dw, De), jnp.float32) / jnp.sqrt(Dw)
    logit_scale = jnp.array([100.0], jnp.float32)

    vid_embeds = jax.random.normal(k4, (N, De), jnp.float32)

    logits = name_tuning_forward(
        vid_embeds, name_perturbation, name_token_mask,
        prompt_name_input_embeds, prompt_name_attn_masks,
        pre_name_offsets, w_text, logit_scale)
    logits = jax.block_until_ready(logits)

    ref = reference_forward(
        vid_embeds, name_perturbation, name_token_mask,
        prompt_name_input_embeds, prompt_name_attn_masks,
        pre_name_offsets, w_text, logit_scale)

    assert logits.shape == (N, C)
    # bf16-streamed embeds + bf16 MXU operands + approx EUP reciprocal, all
    # amplified by logit_scale=100 => loosened tolerance (structure checked in
    # f32 reference).
    np.testing.assert_allclose(np.asarray(logits), np.asarray(ref),
                               rtol=2e-2, atol=1.0)
    print("KERNEL_OK")
</pallas_src>

<mosaic_0001>
module attributes {stable_mosaic.version = 11 : i64} {
  func.func @_text_embeds_kernel(%arg0: i32, %arg1: i32, %arg2: memref<4x8x32xf32, #tpu.memory_space<vmem>>, %arg3: memref<1x4x16x32xbf16, #tpu.memory_space<vmem>>, %arg4: memref<1x4x16xbf16, #tpu.memory_space<vmem>>, %arg5: memref<1x4x8xf32, #tpu.memory_space<vmem>>, %arg6: memref<32x32xf32, #tpu.memory_space<vmem>>, %arg7: memref<32x4xbf16, #tpu.memory_space<vmem>>, %arg8: memref<4x32xf32, #tpu.memory_space<vmem>>, %arg9: memref<4x8xf32, #tpu.memory_space<vmem>>) attributes {dimension_semantics = [#tpu.dimension_semantics<parallel>, #tpu.dimension_semantics<arbitrary>], iteration_bounds = array<i64: 1, 2>, scalar_prefetch = 0 : i64, scratch_operands = 2 : i64, tpu.core_type = #tpu.core_type<tc>, window_params = [{transform_indices = @transform_0, window_bounds = array<i64: 4, 8, 32>}, {transform_indices = @transform_1, window_bounds = array<i64: 1, 4, 16, 32>}, {transform_indices = @transform_2, window_bounds = array<i64: 1, 4, 16>}, {transform_indices = @transform_3, window_bounds = array<i64: 1, 4, 8>}, {pipeline_mode = #tpu.pipeline_mode<synchronous>, transform_indices = @transform_4, window_bounds = array<i64: 32, 32>}, {transform_indices = @transform_5, window_bounds = array<i64: 32, 4>}]} {
    %c0_i32 = arith.constant 0 : i32
    %0 = arith.cmpi eq, %arg1, %c0_i32 : i32
    %1 = arith.extui %0 : i1 to i32
    %c0_i32_0 = arith.constant 0 : i32
    %2 = arith.cmpi ne, %1, %c0_i32_0 : i32
    scf.if %2 {
      %cst_21 = arith.constant 0.000000e+00 : f32
      %33 = vector.broadcast %cst_21 : f32 to vector<4x32xf32>
      %c0_22 = arith.constant 0 : index
      %c0_23 = arith.constant 0 : index
      %34 = vector.load %arg8[%c0_22, %c0_23] : memref<4x32xf32, #tpu.memory_space<vmem>>, vector<4x32xf32>
      tpu.vector_store %arg8[%c0_22, %c0_23], %33 {strides = array<i32>} : memref<4x32xf32, #tpu.memory_space<vmem>>, vector<4x32xf32>,
      %cst_24 = arith.constant 0.000000e+00 : f32
      %35 = vector.broadcast %cst_24 : f32 to vector<4x8xf32>
      %c0_25 = arith.constant 0 : index
      %c0_26 = arith.constant 0 : index
      %36 = vector.load %arg9[%c0_25, %c0_26] : memref<4x8xf32, #tpu.memory_space<vmem>>, vector<4x8xf32>
      tpu.vector_store %arg9[%c0_25, %c0_26], %35 {strides = array<i32>} : memref<4x8xf32, #tpu.memory_space<vmem>>, vector<4x8xf32>,
    } else {
    }
    %c0 = arith.constant 0 : index
    %c0_1 = arith.constant 0 : index
    %c0_2 = arith.constant 0 : index
    %3 = vector.load %arg4[%c0, %c0_1, %c0_2] : memref<1x4x16xbf16, #tpu.memory_space<vmem>>, vector<1x4x16xbf16>
    %4 = vector.shape_cast %3 : vector<1x4x16xbf16> to vector<4x16xbf16>
    %5 = arith.extf %4 : vector<4x16xbf16> to vector<4x16xf32>
    %cst = arith.constant dense<0.000000e+00> : vector<4xf32>
    %6 = vector.multi_reduction <add>, %5, %cst [1] : vector<4x16xf32> to vector<4xf32>
    %7 = vector.shape_cast %6 : vector<4xf32> to vector<4x1xf32>
    %cst_3 = arith.constant 9.99999997E-7 : f32
    %8 = vector.broadcast %cst_3 : f32 to vector<4x1xf32>
    %9 = arith.maximumf %7, %8 : vector<4x1xf32>
    %10 = tpu.reciprocal %9 {approx = true} : vector<4x1xf32> -> vector<4x1xf32>
    %11 = vector.broadcast %10 : vector<4x1xf32> to vector<4x16xf32>
    %12 = arith.mulf %5, %11 : vector<4x16xf32>
    %c0_4 = arith.constant 0 : index
    %c0_5 = arith.constant 0 : index
    %c0_6 = arith.constant 0 : index
    %c0_7 = arith.constant 0 : index
    %13 = vector.load %arg3[%c0_4, %c0_5, %c0_6, %c0_7] : memref<1x4x16x32xbf16, #tpu.memory_space<vmem>>, vector<1x4x16x32xbf16>
    %14 = vector.shape_cast %13 : vector<1x4x16x32xbf16> to vector<4x16x32xbf16>
    %15 = arith.extf %14 : vector<4x16x32xbf16> to vector<4x16x32xf32>
    %c0_8 = arith.constant 0 : index
    %c0_9 = arith.constant 0 : index
    %16 = vector.load %arg8[%c0_8, %c0_9] : memref<4x32xf32, #tpu.memory_space<vmem>>, vector<4x32xf32>
    %17 = vector.shape_cast %12 : vector<4x16xf32> to vector<4x16x1xf32>
    %18 = vector.broadcast %17 : vector<4x16x1xf32> to vector<4x16x32xf32>
    %19 = arith.mulf %15, %18 : vector<4x16x32xf32>
    %cst_10 = arith.constant dense<0.000000e+00> : vector<4x32xf32>
    %20 = vector.multi_reduction <add>, %19, %cst_10 [1] : vector<4x16x32xf32> to vector<4x32xf32>
    %21 = arith.addf %16, %20 : vector<4x32xf32>
    %c0_11 = arith.constant 0 : index
    %c0_12 = arith.constant 0 : index
    %22 = vector.load %arg8[%c0_11, %c0_12] : memref<4x32xf32, #tpu.memory_space<vmem>>, vector<4x32xf32>
    tpu.vector_store %arg8[%c0_11, %c0_12], %21 {strides = array<i32>} : memref<4x32xf32, #tpu.memory_space<vmem>>, vector<4x32xf32>,
    %c0_13 = arith.constant 0 : index
    %c0_14 = arith.constant 0 : index
    %23 = vector.load %arg9[%c0_13, %c0_14] : memref<4x8xf32, #tpu.memory_space<vmem>>, vector<4x8xf32>
    %c0_15 = arith.constant 0 : index
    %c0_16 = arith.constant 0 : index
    %c0_17 = arith.constant 0 : index
    %24 = vector.load %arg5[%c0_15, %c0_16, %c0_17] : memref<1x4x8xf32, #tpu.memory_space<vmem>>, vector<1x4x8xf32>
    %25 = vector.shape_cast %24 : vector<1x4x8xf32> to vector<4x8xf32>
    %26 = vector.broadcast %10 : vector<4x1xf32> to vector<4x8xf32>
    %27 = arith.mulf %25, %26 : vector<4x8xf32>
    %28 = arith.addf %23, %27 : vector<4x8xf32>
    %c0_18 = arith.constant 0 : index
    %c0_19 = arith.constant 0 : index
    %29 = vector.load %arg9[%c0_18, %c0_19] : memref<4x8xf32, #tpu.memory_space<vmem>>, vector<4x8xf32>
    tpu.vector_store %arg9[%c0_18, %c0_19], %28 {strides = array<i32>} : memref<4x8xf32, #tpu.memory_space<vmem>>, vector<4x8xf32>,
    %c1_i32 = arith.constant 1 : i32
    %30 = arith.cmpi eq, %arg1, %c1_i32 : i32
    %31 = arith.extui %30 : i1 to i32
    %c0_i32_20 = arith.constant 0 : i32
    %32 = arith.cmpi ne, %31, %c0_i32_20 : i32
    scf.if %32 {
      %c0_21 = arith.constant 0 : index
      %c0_22 = arith.constant 0 : index
      %c0_23 = arith.constant 0 : index
      %33 = vector.load %arg2[%c0_21, %c0_22, %c0_23] : memref<4x8x32xf32, #tpu.memory_space<vmem>>, vector<4x8x32xf32>
      %c0_24 = arith.constant 0 : index
      %c0_25 = arith.constant 0 : index
      %34 = vector.load %arg9[%c0_24, %c0_25] : memref<4x8xf32, #tpu.memory_space<vmem>>, vector<4x8xf32>
      %35 = vector.shape_cast %34 : vector<4x8xf32> to vector<4x8x1xf32>
      %36 = vector.broadcast %35 : vector<4x8x1xf32> to vector<4x8x32xf32>
      %37 = arith.mulf %33, %36 : vector<4x8x32xf32>
      %cst_26 = arith.constant dense<0.000000e+00> : vector<4x32xf32>
      %38 = vector.multi_reduction <add>, %37, %cst_26 [1] : vector<4x8x32xf32> to vector<4x32xf32>
      %c0_27 = arith.constant 0 : index
      %c0_28 = arith.constant 0 : index
      %39 = vector.load %arg8[%c0_27, %c0_28] : memref<4x32xf32, #tpu.memory_space<vmem>>, vector<4x32xf32>
      %40 = arith.addf %39, %38 : vector<4x32xf32>
      %cst_29 = arith.constant 5.000000e-01 : f32
      %41 = vector.broadcast %cst_29 : f32 to vector<4x32xf32>
      %42 = arith.mulf %40, %41 : vector<4x32xf32>
      %c0_30 = arith.constant 0 : index
      %c0_31 = arith.constant 0 : index
      %43 = vector.load %arg6[%c0_30, %c0_31] : memref<32x32xf32, #tpu.memory_space<vmem>>, vector<32x32xf32>
      %cst_32 = arith.constant dense<0.000000e+00> : vector<32x4xf32>
      %44 = tpu.matmul %43, %42, %cst_32 {dimension_numbers = #tpu.dot_dimension_numbers<[0], [1], [1], [0], [0, 1, 1, 0], [], []>} : vector<32x32xf32>, vector<4x32xf32>, vector<32x4xf32> -> vector<32x4xf32>
      %45 = arith.mulf %44, %44 : vector<32x4xf32>
      %cst_33 = arith.constant dense<0.000000e+00> : vector<4xf32>
      %46 = vector.multi_reduction <add>, %45, %cst_33 [0] : vector<32x4xf32> to vector<4xf32>
      %47 = vector.shape_cast %46 : vector<4xf32> to vector<1x4xf32>
      %cst_34 = arith.constant 1.000000e-24 : f32
      %48 = vector.broadcast %cst_34 : f32 to vector<1x4xf32>
      %49 = arith.maximumf %47, %48 : vector<1x4xf32>
      %50 = math.rsqrt %49 : vector<1x4xf32>
      %51 = vector.broadcast %50 : vector<1x4xf32> to vector<32x4xf32>
      %52 = arith.mulf %44, %51 : vector<32x4xf32>
      %53 = arith.truncf %52 : vector<32x4xf32> to vector<32x4xbf16>
      %c0_35 = arith.constant 0 : index
      %c0_36 = arith.constant 0 : index
      %54 = vector.load %arg7[%c0_35, %c0_36] : memref<32x4xbf16, #tpu.memory_space<vmem>>, vector<32x4xbf16>
      tpu.vector_store %arg7[%c0_35, %c0_36], %53 {strides = array<i32>} : memref<32x4xbf16, #tpu.memory_space<vmem>>, vector<32x4xbf16>,
    } else {
    }
    return
  }
  func.func @transform_0(%arg0: i32, %arg1: i32) -> (i32, i32, i32) {
    %c0_i32 = arith.constant 0 : i32
    %c0_i32_0 = arith.constant 0 : i32
    %c0_i32_1 = arith.constant 0 : i32
    return %arg0, %c0_i32, %c0_i32_0 : i32, i32, i32
  }
  func.func @transform_1(%arg0: i32, %arg1: i32) -> (i32, i32, i32, i32) {
    %c0_i32 = arith.constant 0 : i32
    %c0_i32_0 = arith.constant 0 : i32
    %c0_i32_1 = arith.constant 0 : i32
    return %arg1, %arg0, %c0_i32, %c0_i32_0 : i32, i32, i32, i32
  }
  func.func @transform_2(%arg0: i32, %arg1: i32) -> (i32, i32, i32) {
    %c0_i32 = arith.constant 0 : i32
    %c0_i32_0 = arith.constant 0 : i32
    return %arg1, %arg0, %c0_i32 : i32, i32, i32
  }
  func.func @transform_3(%arg0: i32, %arg1: i32) -> (i32, i32, i32) {
    %c0_i32 = arith.constant 0 : i32
    %c0_i32_0 = arith.constant 0 : i32
    return %arg1, %arg0, %c0_i32 : i32, i32, i32
  }
  func.func @transform_4(%arg0: i32, %arg1: i32) -> (i32, i32) {
    %c0_i32 = arith.constant 0 : i32
    %c0_i32_0 = arith.constant 0 : i32
    %c0_i32_1 = arith.constant 0 : i32
    return %c0_i32, %c0_i32_0 : i32, i32
  }
  func.func @transform_5(%arg0: i32, %arg1: i32) -> (i32, i32) {
    %c0_i32 = arith.constant 0 : i32
    %c0_i32_0 = arith.constant 0 : i32
    return %c0_i32, %arg0 : i32, i32
  }
}

</mosaic_0001>

<llo_original>
// kernel: tpu_custom_call.1
$region0: #{tpu_custom_call.1}
  #allocation0 [shape = 'u32[]', space=smem, size = 0x4, offset = 0x4, fixed_abs, tag = 'smem constant byte address 0x4 - core index']
  #allocation1 [shape = 'u32[144,128]{1,0:T(1,128)}', space=vmem, size = 0x12000, scoped, tag = 'internal scratch']
  #allocation2 [shape = 'f32[4,32]{1,0:T(4,128)}', space=vmem, size = 0x800, scoped, tag = 'scratch operand']
  #allocation3 [shape = 'f32[4,8]{1,0:T(4,128)}', space=vmem, size = 0x800, scoped, tag = 'scratch operand']
  %s0 = inlined_call_operand.hbm [shape: f32[4,8,32], index: 0, kind: input, shape index: {}]
  %s1 = inlined_call_operand.hbm [shape: bf16[2,4,16,32], index: 1, kind: input, shape index: {}]
  %s2 = inlined_call_operand.hbm [shape: bf16[2,4,16], index: 2, kind: input, shape index: {}]
  %s3 = inlined_call_operand.hbm [shape: f32[2,4,8], index: 3, kind: input, shape index: {}]
  %s4 = inlined_call_operand.hbm [shape: f32[32,32], index: 4, kind: input, shape index: {}]
  %s5 = inlined_call_operand.vmem [shape: bf16[32,4], index: 5, kind: output, shape index: {}]
  %s6 = sld [smem:[#allocation0]]
  $region81: #{tpu_custom_call.1} parent=0
    _
  %s8 = ssub.s32 1, %s6
  %s9 = scalar_select 0, %s8, %s6
  $region1: #{tpu_custom_call.1} parent=0
    #allocation4 [shape = 'u8[16384]{0}', space=vmem, size = 0x4000, scoped, tag = 'input window, operand 0, single buffered']
    #allocation5 [shape = 's32[2]{0}', space=sflag, size = 0x8, scoped, tag = 'scoped memory for tpu_custom_call.1']
    #allocation6 [shape = 'u8[32768]{0}', space=vmem, size = 0x8000, scoped, tag = 'input window, operand 1']
    #allocation7 [shape = 's32[2]{0}', space=sflag, size = 0x8, scoped, tag = 'scoped memory for tpu_custom_call.1']
    #allocation8 [shape = 'u8[2048]{0}', space=vmem, size = 0x800, scoped, tag = 'input window, operand 2']
    #allocation9 [shape = 'u8[4096]{0}', space=vmem, size = 0x1000, scoped, tag = 'input window, operand 3']
    #allocation10 [shape = 's32[2]{0}', space=sflag, size = 0x8, scoped, tag = 'scoped memory for tpu_custom_call.1']
    #allocation11 [shape = 'u8[16384]{0}', space=vmem, size = 0x4000, scoped, tag = 'input window, operand 4, single buffered']
    %10 = vsyncpa [#allocation5], 0
    %11 = vsyncpa [#allocation7], 0
    %s12 = scalar_lea.sflag [#allocation7], 1
    %13 = vsyncpa %s12, 0
    %14 = vsyncpa [#allocation10], 0
    %s15 = scalar_lea.sflag [#allocation10], 1
    %16 = vsyncpa %s15, 0
    loop: start=0, step=1, limit=4
    $region2: #{tpu_custom_call.1} parent=1 // loop_pre_header
      _
    $region3: #{tpu_custom_call.1} parent=1 // loop_header
      %s18 = sphi 0, %s22
      %p19 = scmp.ge.s32.totalorder %s18, 4
      %s25 = sphi 0, %s37
      %s26 = sphi 0, %s33
      %s27 = sphi 0, %s25
      %s28 = sphi 0, %s26
      %s29 = sphi 0, %s27
      %s30 = sphi 0, %s28
      %s40 = sphi 0, %s42
      %s43 = sphi 0, %s40
      %s44 = sphi 0, %s43
      %s60 = sphi 0, %s44
      %s68 = sphi 0, %s70
      %s71 = sphi 0, %s68
      %s72 = sphi 0, %s71
      %s88 = sphi 0, %s72
      %s96 = sphi 0, %s98
      %s99 = sphi 0, %s96
      %s100 = sphi 0, %s99
      %s116 = sphi 0, %s100
      %s124 = sphi 0, %s126
      %s127 = sphi 0, %s124
      %s128 = sphi 0, %s127
      %s144 = sphi 0, %s128
      %s148 = sphi 0, %s148
      %s150 = sphi 0, %s148
      %s151 = sphi 0, %s150
      %s165 = sphi 0, %s151
      %s171 = sphi 0, %s173
      %s174 = sphi 0, %s171
      %s175 = sphi 0, %s174
      %s191 = sphi 0, %s175
    $region4: #{tpu_custom_call.1} parent=1 // loop_header_branch
      %21 = sbr.rel (%p19) target = $region8
    $region5: #{tpu_custom_call.1} parent=1 // loop_body
      %s23 = ssub.s32 %s18, 1
      %s24 = ssub.s32 %s18, 2
      %s31 = sadd.s32 1, %s26
      %p32 = scmp.ge.s32.totalorder %s31, 2
      %s33 = scalar_select %p32, 0, %s31
      %s34 = sadd.s32 1, %s25
      %s35 = scalar_select %p32, %s34, %s25
      %p36 = scmp.ge.s32.totalorder %s35, 1
      %s37 = scalar_select %p36, 0, %s35
      %s38 = ssub.s32 %s25, %s37
      %p39 = scmp.eq.s32.totalorder %s38, 0
      %s41 = sadd.s32 %s40, 1
      %s42 = scalar_select %p39, %s40, %s41
      %p45 = pneg %p39
      %p46 = scmp.eq.s32.totalorder %s18, 1
      %p47 = por %p45, %p46
      %p48 = scmp.ne.s32.totalorder %s40, %s43
      %p49 = scmp.eq.s32.totalorder %s18, 0
      %p50 = por %p48, %p49
      %p51 = scmp.ne.s32.totalorder %s40, %s43
      %p52 = scmp.eq.s32.totalorder %s23, 1
      %p53 = por %p51, %p52
      %p54 = scmp.ne.s32.totalorder %s43, %s44
      %p55 = scmp.eq.s32.totalorder %s23, 0
      %p56 = por %p54, %p55
      %p57 = scmp.ne.s32.totalorder %s43, %s44
      %p58 = scmp.eq.s32.totalorder %s24, 1
      %p59 = por %p57, %p58
      %p61 = scmp.ne.s32.totalorder %s44, %s60
      %p62 = scmp.eq.s32.totalorder %s24, 0
      %p63 = por %p61, %p62
      %s64 = ssub.s32 %s26, %s33
      %s65 = ssub.s32 %s25, %s37
      %s66 = sor.u32 %s64, %s65
      %p67 = scmp.eq.s32.totalorder %s66, 0
      %s69 = sadd.s32 %s68, 1
      %s70 = scalar_select %p67, %s68, %s69
      %p73 = pneg %p67
      %p74 = scmp.eq.s32.totalorder %s18, 1
      %p75 = por %p73, %p74
      %p76 = scmp.ne.s32.totalorder %s68, %s71
      %p77 = scmp.eq.s32.totalorder %s18, 0
      %p78 = por %p76, %p77
      %p79 = scmp.ne.s32.totalorder %s68, %s71
      %p80 = scmp.eq.s32.totalorder %s23, 1
      %p81 = por %p79, %p80
      %p82 = scmp.ne.s32.totalorder %s71, %s72
      %p83 = scmp.eq.s32.totalorder %s23, 0
      %p84 = por %p82, %p83
      %p85 = scmp.ne.s32.totalorder %s71, %s72
      %p86 = scmp.eq.s32.totalorder %s24, 1
      %p87 = por %p85, %p86
      %p89 = scmp.ne.s32.totalorder %s72, %s88
      %p90 = scmp.eq.s32.totalorder %s24, 0
      %p91 = por %p89, %p90
      %s92 = ssub.s32 %s26, %s33
      %s93 = ssub.s32 %s25, %s37
      %s94 = sor.u32 %s92, %s93
      %p95 = scmp.eq.s32.totalorder %s94, 0
      %s97 = sadd.s32 %s96, 1
      %s98 = scalar_select %p95, %s96, %s97
      %p101 = pneg %p95
      %p102 = scmp.eq.s32.totalorder %s18, 1
      %p103 = por %p101, %p102
      %p104 = scmp.ne.s32.totalorder %s96, %s99
      %p105 = scmp.eq.s32.totalorder %s18, 0
      %p106 = por %p104, %p105
      %p107 = scmp.ne.s32.totalorder %s96, %s99
      %p108 = scmp.eq.s32.totalorder %s23, 1
      %p109 = por %p107, %p108
      %p110 = scmp.ne.s32.totalorder %s99, %s100
      %p111 = scmp.eq.s32.totalorder %s23, 0
      %p112 = por %p110, %p111
      %p113 = scmp.ne.s32.totalorder %s99, %s100
      %p114 = scmp.eq.s32.totalorder %s24, 1
      %p115 = por %p113, %p114
      %p117 = scmp.ne.s32.totalorder %s100, %s116
      %p118 = scmp.eq.s32.totalorder %s24, 0
      %p119 = por %p117, %p118
      %s120 = ssub.s32 %s26, %s33
      %s121 = ssub.s32 %s25, %s37
      %s122 = sor.u32 %s120, %s121
      %p123 = scmp.eq.s32.totalorder %s122, 0
      %s125 = sadd.s32 %s124, 1
      %s126 = scalar_select %p123, %s124, %s125
      %p129 = pneg %p123
      %p130 = scmp.eq.s32.totalorder %s18, 1
      %p131 = por %p129, %p130
      %p132 = scmp.ne.s32.totalorder %s124, %s127
      %p133 = scmp.eq.s32.totalorder %s18, 0
      %p134 = por %p132, %p133
      %p135 = scmp.ne.s32.totalorder %s124, %s127
      %p136 = scmp.eq.s32.totalorder %s23, 1
      %p137 = por %p135, %p136
      %p138 = scmp.ne.s32.totalorder %s127, %s128
      %p139 = scmp.eq.s32.totalorder %s23, 0
      %p140 = por %p138, %p139
      %p141 = scmp.ne.s32.totalorder %s127, %s128
      %p142 = scmp.eq.s32.totalorder %s24, 1
      %p143 = por %p141, %p142
      %p145 = scmp.ne.s32.totalorder %s128, %s144
      %p146 = scmp.eq.s32.totalorder %s24, 0
      %p147 = por %p145, %p146
      %s149 = sadd.s32 %s148, 1
      %p152 = scmp.eq.s32.totalorder %s18, 1
      %p153 = scmp.ne.s32.totalorder %s148, %s150
      %p154 = scmp.eq.s32.totalorder %s18, 0
      %p155 = por %p153, %p154
      %p156 = scmp.ne.s32.totalorder %s148, %s150
      %p157 = scmp.eq.s32.totalorder %s23, 1
      %p158 = por %p156, %p157
      %p159 = scmp.ne.s32.totalorder %s150, %s151
      %p160 = scmp.eq.s32.totalorder %s23, 0
      %p161 = por %p159, %p160
      %p162 = scmp.ne.s32.totalorder %s150, %s151
      %p163 = scmp.eq.s32.totalorder %s24, 1
      %p164 = por %p162, %p163
      %p166 = scmp.ne.s32.totalorder %s151, %s165
      %p167 = scmp.eq.s32.totalorder %s24, 0
      %p168 = por %p166, %p167
      %s169 = ssub.s32 %s25, %s37
      %p170 = scmp.eq.s32.totalorder %s169, 0
      %s172 = sadd.s32 %s171, 1
      %s173 = scalar_select %p170, %s171, %s172
      %p176 = pneg %p170
      %p177 = scmp.eq.s32.totalorder %s18, 1
      %p178 = por %p176, %p177
      %p179 = scmp.ne.s32.totalorder %s171, %s174
      %p180 = scmp.eq.s32.totalorder %s18, 0
      %p181 = por %p179, %p180
      %p182 = scmp.ne.s32.totalorder %s171, %s174
      %p183 = scmp.eq.s32.totalorder %s23, 1
      %p184 = por %p182, %p183
      %p185 = scmp.ne.s32.totalorder %s174, %s175
      %p186 = scmp.eq.s32.totalorder %s23, 0
      %p187 = por %p185, %p186
      %p188 = scmp.ne.s32.totalorder %s174, %s175
      %p189 = scmp.eq.s32.totalorder %s24, 1
      %p190 = por %p188, %p189
      %p192 = scmp.ne.s32.totalorder %s175, %s191
      %p193 = scmp.eq.s32.totalorder %s24, 0
      %p194 = por %p192, %p193
      %p195 = scmp.le.s32.totalorder 1, %s18
      %p196 = scmp.lt.s32.totalorder %s18, 3
      %p197 = pnand %p195, %p196
      %p198 = pneg %p197
      // Predicated region
      $region9: #{tpu_custom_call.1} parent=5 // pred_check
        _
      $region10: #{tpu_custom_call.1} parent=5 // pred_check_branch
        %200 = sbr.rel (%p197) target = $region12
      $region11: #{tpu_custom_call.1} parent=5 // pred_region
        %s201 = ssub.s32 %s18, 1
        // Predicated region
        $region13: #{tpu_custom_call.1} parent=11 // pred_check
          %p202 = pneg %p56
        $region14: #{tpu_custom_call.1} parent=11 // pred_check_branch
          %204 = sbr.rel (%p202) target = $region16
        $region15: #{tpu_custom_call.1} parent=11 // pred_region
          %s205 = smul.u32 4, %s27
          %s207 = ssub.s32 512, 512
          %208 = vsyncadd [#allocation5], %s207
          %s209 = smul.addr %s205, 128
          %s210 = scalar_lea.hbm %s0, %s209
          %s211 = sshll.u32 [#allocation4], 4
          %s212 = int_to_ptr.vmem [resolvable:$true] %s211
          %217 = dma.hbm_to_vmem [thread:$0]  %s210, 512, %s212, [#allocation5], 128, 128, 8
        $region16: #{tpu_custom_call.1} parent=11 // pred_fallthru
          _
        // Predicated region
        $region17: #{tpu_custom_call.1} parent=11 // pred_check
          %p218 = pneg %p161
        $region18: #{tpu_custom_call.1} parent=11 // pred_check_branch
          %220 = sbr.rel (%p218) target = $region20
        $region19: #{tpu_custom_call.1} parent=11 // pred_region
          %s222 = ssub.s32 512, 512
          %223 = vsyncadd [#allocation10], %s222
          %s224 = sshll.u32 [#allocation11], 4
          %s225 = int_to_ptr.vmem [resolvable:$true] %s224
          %230 = dma.hbm_to_vmem [thread:$0]  %s4, 512, %s225, [#allocation10], 128, 128, 8
        $region20: #{tpu_custom_call.1} parent=11 // pred_fallthru
          _
      $region12: #{tpu_custom_call.1} parent=5 // pred_fallthru
        _
      %p231 = scmp.lt.s32.totalorder %s18, 2
      // Predicated region
      $region21: #{tpu_custom_call.1} parent=5 // pred_check
        %p232 = pneg %p231
      $region22: #{tpu_custom_call.1} parent=5 // pred_check_branch
        %234 = sbr.rel (%p232) target = $region24
      $region23: #{tpu_custom_call.1} parent=5 // pred_region
        // Predicated region
        $region25: #{tpu_custom_call.1} parent=23 // pred_check
          %p235 = pneg %p78
        $region26: #{tpu_custom_call.1} parent=23 // pred_check_branch
          %237 = sbr.rel (%p235) target = $region28
        $region27: #{tpu_custom_call.1} parent=23 // pred_region
          %s238 = sand.u32 %s18, 1
          %s239 = scalar_lea.sflag [#allocation7], %s238
          %s240 = sand.u32 %s68, 1
          %s241 = smul.addr %s240, 32
          %s242 = scalar_lea.vmem [#allocation6], %s241
          %s243 = smul.u32 4, %s25
          %s245 = ssub.s32 512, 512
          %246 = vsyncadd %s239, %s245
          %s247 = smul.addr %s243, 2
          %s248 = smul.addr %s26, 8
          %s249 = sadd.s32 %s247, %s248
          %s250 = smul.addr %s249, 64
          %s251 = scalar_lea.hbm %s1, %s250
          %s252 = sshll.u32 %s242, 4
          %s253 = int_to_ptr.vmem [resolvable:$true] %s252
          %258 = dma.hbm_to_vmem [thread:$0]  %s251, 512, %s253, %s239, 64, 64, 4
        $region28: #{tpu_custom_call.1} parent=23 // pred_fallthru
          _
        // Predicated region
        $region29: #{tpu_custom_call.1} parent=23 // pred_check
          %p259 = pneg %p106
        $region30: #{tpu_custom_call.1} parent=23 // pred_check_branch
          %261 = sbr.rel (%p259) target = $region32
        $region31: #{tpu_custom_call.1} parent=23 // pred_region
          %s262 = sand.u32 %s18, 1
          %s263 = scalar_lea.sflag [#allocation7], %s262
          %s264 = sand.u32 %s96, 1
          %s265 = smul.addr %s264, 2
          %s266 = scalar_lea.vmem [#allocation8], %s265
          %s268 = ssub.s32 32, 32
          %269 = vsyncadd %s263, %s268
          %s270 = sadd.s32 %s25, %s26
          %s271 = smul.addr %s270, 32
          %s272 = scalar_lea.hbm %s2, %s271
          %s274 = sshll.u32 %s266, 4
          %s275 = int_to_ptr.vmem [resolvable:$true] %s274
          %277 = dma.hbm_to_vmem [thread:$0]  %s272, 32, %s275, %s263
        $region32: #{tpu_custom_call.1} parent=23 // pred_fallthru
          _
        // Predicated region
        $region33: #{tpu_custom_call.1} parent=23 // pred_check
          %p278 = pneg %p134
        $region34: #{tpu_custom_call.1} parent=23 // pred_check_branch
          %280 = sbr.rel (%p278) target = $region36
        $region35: #{tpu_custom_call.1} parent=23 // pred_region
          %s281 = sand.u32 %s18, 1
          %s282 = scalar_lea.sflag [#allocation10], %s281
          %s283 = sand.u32 %s124, 1
          %s284 = smul.addr %s283, 4
          %s285 = scalar_lea.vmem [#allocation9], %s284
          %s287 = ssub.s32 64, 64
          %288 = vsyncadd %s282, %s287
          %s289 = sadd.s32 %s25, %s26
          %s290 = smul.addr %s289, 64
          %s291 = scalar_lea.hbm %s3, %s290
          %s293 = sshll.u32 %s285, 4
          %s294 = int_to_ptr.vmem [resolvable:$true] %s293
          %296 = dma.hbm_to_vmem [thread:$0]  %s291, 64, %s294, %s282
        $region36: #{tpu_custom_call.1} parent=23 // pred_fallthru
          _
      $region24: #{tpu_custom_call.1} parent=5 // pred_fallthru
        _
      %p297 = scmp.le.s32.totalorder 1, %s18
      %p298 = scmp.lt.s32.totalorder %s18, 3
      %p299 = pnand %p297, %p298
      %p300 = pneg %p299
      // Predicated region
      $region37: #{tpu_custom_call.1} parent=5 // pred_check
        _
      $region38: #{tpu_custom_call.1} parent=5 // pred_check_branch
        %302 = sbr.rel (%p299) target = $region40
      $region39: #{tpu_custom_call.1} parent=5 // pred_region
        %s303 = ssub.s32 %s18, 1
        // Predicated region
        $region41: #{tpu_custom_call.1} parent=39 // pred_check
          %p304 = pneg %p56
        $region42: #{tpu_custom_call.1} parent=39 // pred_check_branch
          %306 = sbr.rel (%p304) target = $region44
        $region43: #{tpu_custom_call.1} parent=39 // pred_region
          %307 = dma.done [#allocation5], 512
        $region44: #{tpu_custom_call.1} parent=39 // pred_fallthru
          _
        %s308 = sand.u32 %s23, 1
        %s309 = scalar_lea.sflag [#allocation7], %s308
        %s310 = sand.u32 %s71, 1
        %s311 = smul.addr %s310, 32
        %s312 = scalar_lea.vmem [#allocation6], %s311
        // Predicated region
        $region45: #{tpu_custom_call.1} parent=39 // pred_check
          %p313 = pneg %p84
        $region46: #{tpu_custom_call.1} parent=39 // pred_check_branch
          %315 = sbr.rel (%p313) target = $region48
        $region47: #{tpu_custom_call.1} parent=39 // pred_region
          %316 = dma.done %s309, 512
        $region48: #{tpu_custom_call.1} parent=39 // pred_fallthru
          _
        %s317 = sand.u32 %s23, 1
        %s318 = scalar_lea.sflag [#allocation7], %s317
        %s319 = sand.u32 %s99, 1
        %s320 = smul.addr %s319, 2
        %s321 = scalar_lea.vmem [#allocation8], %s320
        // Predicated region
        $region49: #{tpu_custom_call.1} parent=39 // pred_check
          %p322 = pneg %p112
        $region50: #{tpu_custom_call.1} parent=39 // pred_check_branch
          %324 = sbr.rel (%p322) target = $region52
        $region51: #{tpu_custom_call.1} parent=39 // pred_region
          %325 = dma.done %s318, 32
        $region52: #{tpu_custom_call.1} parent=39 // pred_fallthru
          _
        %s326 = sand.u32 %s23, 1
        %s327 = scalar_lea.sflag [#allocation10], %s326
        %s328 = sand.u32 %s127, 1
        %s329 = smul.addr %s328, 4
        %s330 = scalar_lea.vmem [#allocation9], %s329
        // Predicated region
        $region53: #{tpu_custom_call.1} parent=39 // pred_check
          %p331 = pneg %p140
        $region54: #{tpu_custom_call.1} parent=39 // pred_check_branch
          %333 = sbr.rel (%p331) target = $region56
        $region55: #{tpu_custom_call.1} parent=39 // pred_region
          %334 = dma.done %s327, 64
        $region56: #{tpu_custom_call.1} parent=39 // pred_fallthru
          _
        // Predicated region
        $region57: #{tpu_custom_call.1} parent=39 // pred_check
          %p335 = pneg %p161
        $region58: #{tpu_custom_call.1} parent=39 // pred_check_branch
          %337 = sbr.rel (%p335) target = $region60
        $region59: #{tpu_custom_call.1} parent=39 // pred_region
          %338 = dma.done [#allocation10], 512
        $region60: #{tpu_custom_call.1} parent=39 // pred_fallthru
          _
        %p339 = pneg %p56
        %p340 = pneg %p53
        %s341 = sand.u32 %s23, 1
        %s342 = scalar_lea.sflag [#allocation7], %s341
        %s343 = sand.u32 %s71, 1
        %s344 = smul.addr %s343, 32
        %s345 = scalar_lea.vmem [#allocation6], %s344
        %p346 = pneg %p84
        %p347 = pneg %p81
        %s348 = sand.u32 %s23, 1
        %s349 = scalar_lea.sflag [#allocation7], %s348
        %s350 = sand.u32 %s99, 1
        %s351 = smul.addr %s350, 2
        %s352 = scalar_lea.vmem [#allocation8], %s351
        %p353 = pneg %p112
        %p354 = pneg %p109
        %s355 = sand.u32 %s23, 1
        %s356 = scalar_lea.sflag [#allocation10], %s355
        %s357 = sand.u32 %s127, 1
        %s358 = smul.addr %s357, 4
        %s359 = scalar_lea.vmem [#allocation9], %s358
        %p360 = pneg %p140
        %p361 = pneg %p137
        %p362 = pneg %p161
        %p363 = pneg %p158
        %p364 = pneg %p187
        %p365 = pneg %p184
        %p366 = scmp.lt.s32.totalorder %s27, 0
        %s367 = scalar_select %p366, %s27, 0
        %s368 = smul.addr %s367, 4
        %s369 = scalar_lea.vmem %s5, %s368
        %s370 = smul.u32 4, %s27
        %s371 = smul.u32 4, %s27
        %p372 = scmp.lt.s32.totalorder %s27, 0
        %s373 = scalar_select %p372, %s27, 0
        %s374 = smul.addr %s373, 4
        %s375 = scalar_lea.vmem %s5, %s374
        %p376 = scmp.eq.s32.totalorder %s28, 0
        // Predicated region
        $region61: #{tpu_custom_call.1} parent=39 // pred_check
          %p377 = pneg %p376
        $region62: #{tpu_custom_call.1} parent=39 // pred_check_branch
          %379 = sbr.rel (%p377) target = $region64
        $region63: #{tpu_custom_call.1} parent=39 // pred_region
          %vm380 = vcmask 257024
          %381 = vst.msk [vmem:[#allocation2] sm:$0xf] %vm380, 0.0
          %vm382 = vcmask 60416
          %383 = vst.msk [vmem:[#allocation3] sm:$0xf] %vm382, 0.0
        $region64: #{tpu_custom_call.1} parent=39 // pred_fallthru
          _
        %v384 = vld [vmem:[%s321] sm:$0x3]
        %v385 = vunpack.c.l.bf16 %v384
        %vm386 = vcmask 125952
        %v387 = vsel %vm386, %v385, 0.0
        %388 = vadd.xlane.f32.xlu0 %v387
        %v389 = vpop.xlane.xlu0 %388
        %v390 = vmax.f32 %v389, 1e-06
        %v391 = vrcp.pop %v390
        %v392 = vmul.f32 %v385, %v391
        %v393 = vld [vmem:[%s312] sm:$0xf]
        %v394 = vld [vmem:[%s312 + $0x4] sm:$0xf]
        %v395 = vld [vmem:[%s312 + $0x8] sm:$0xf]
        %v396 = vld [vmem:[%s312 + $0xc] sm:$0xf]
        %v397 = vld [vmem:[%s312 + $0x10] sm:$0xf]
        %v398 = vld [vmem:[%s312 + $0x14] sm:$0xf]
        %v399 = vld [vmem:[%s312 + $0x18] sm:$0xf]
        %v400 = vld [vmem:[%s312 + $0x1c] sm:$0xf]
        %v401 = vunpack.c.l.bf16 %v393
        %v402 = vunpack.c.l.bf16 %v394
        %v403 = vunpack.c.l.bf16 %v395
        %v404 = vunpack.c.l.bf16 %v396
        %v405 = vunpack.c.l.bf16 %v397
        %v406 = vunpack.c.l.bf16 %v398
        %v407 = vunpack.c.l.bf16 %v399
        %v408 = vunpack.c.l.bf16 %v400
        %v409 = vld [vmem:[#allocation2] sm:$0xf]
        %v410 = vlaneseq
        %v411 = vshrl.u32 %v410, 7
        %v412 = vsub.s32 0, %v411
        %v413 = vrot.slane %v392, %v412
        %415 = vbcast.lane.b32.xlu0 %v413, 256
        %v416 = vpop.permute.xlu0 %415
        %s418 = sor.u32 256, 8
        %419 = vbcast.lane.b32.xlu0 %v413, %s418
        %v420 = vpop.permute.xlu0 %419
        %v421 = vlaneseq
        %v422 = vshrl.u32 %v421, 7
        %v423 = vsub.s32 1, %v422
        %v424 = vrot.slane %v392, %v423
        %426 = vbcast.lane.b32.xlu0 %v424, 256
        %v427 = vpop.permute.xlu0 %426
        %s429 = sor.u32 256, 8
        %430 = vbcast.lane.b32.xlu0 %v424, %s429
        %v431 = vpop.permute.xlu0 %430
        %v432 = vlaneseq
        %v433 = vshrl.u32 %v432, 7
        %v434 = vsub.s32 2, %v433
        %v435 = vrot.slane %v392, %v434
        %437 = vbcast.lane.b32.xlu0 %v435, 256
        %v438 = vpop.permute.xlu0 %437
        %s440 = sor.u32 256, 8
        %441 = vbcast.lane.b32.xlu0 %v435, %s440
        %v442 = vpop.permute.xlu0 %441
        %v443 = vlaneseq
        %v444 = vshrl.u32 %v443, 7
        %v445 = vsub.s32 3, %v444
        %v446 = vrot.slane %v392, %v445
        %448 = vbcast.lane.b32.xlu0 %v446, 256
        %v449 = vpop.permute.xlu0 %448
        %s451 = sor.u32 256, 8
        %452 = vbcast.lane.b32.xlu0 %v446, %s451
        %v453 = vpop.permute.xlu0 %452
        %v454 = vmul.f32 %v401, %v416
        %v455 = vmul.f32 %v402, %v420
        %v456 = vmul.f32 %v403, %v427
        %v457 = vmul.f32 %v404, %v431
        %v458 = vmul.f32 %v405, %v438
        %v459 = vmul.f32 %v406, %v442
        %v460 = vmul.f32 %v407, %v449
        %v461 = vmul.f32 %v408, %v453
        %vm462 = vcmask 261120
        %v463 = vsel %vm462, %v454, 0.0
        %v464 = vsel %vm462, %v455, 0.0
        %v465 = vadd.f32 %v463, %v464
        %v466 = vrot.slane %v465, 4
        %v467 = vadd.f32 %v465, %v466
        %v468 = vrot.slane %v467, 2
        %v469 = vadd.f32 %v467, %v468
        %v470 = vrot.slane %v469, 1
        %v471 = vadd.f32 %v469, %v470
        %v472 = vsel %vm462, %v456, 0.0
        %v473 = vsel %vm462, %v457, 0.0
        %v474 = vadd.f32 %v472, %v473
        %v475 = vrot.slane %v474, 4
        %v476 = vadd.f32 %v474, %v475
        %v477 = vrot.slane %v476, 2
        %v478 = vadd.f32 %v476, %v477
        %v479 = vrot.slane %v478, 1
        %v480 = vadd.f32 %v478, %v479
        %v481 = vsel %vm462, %v458, 0.0
        %v482 = vsel %vm462, %v459, 0.0
        %v483 = vadd.f32 %v481, %v482
        %v484 = vrot.slane %v483, 4
        %v485 = vadd.f32 %v483, %v484
        %v486 = vrot.slane %v485, 2
        %v487 = vadd.f32 %v485, %v486
        %v488 = vrot.slane %v487, 1
        %v489 = vadd.f32 %v487, %v488
        %v490 = vsel %vm462, %v460, 0.0
        %v491 = vsel %vm462, %v461, 0.0
        %v492 = vadd.f32 %v490, %v491
        %v493 = vrot.slane %v492, 4
        %v494 = vadd.f32 %v492, %v493
        %v495 = vrot.slane %v494, 2
        %v496 = vadd.f32 %v494, %v495
        %v497 = vrot.slane %v496, 1
        %v498 = vadd.f32 %v496, %v497
        %vm503 = vcmask 1041409
        %v504 = vsel %vm503, %v480, %v471
        %vm505 = vcmask 1042434
        %v506 = vsel %vm505, %v489, %v504
        %vm507 = vcmask 1043459
        %v508 = vsel %vm507, %v498, %v506
        %v510 = vadd.f32 %v409, %v508
        %vm511 = vcmask 257024
        %512 = vst.msk [vmem:[#allocation2] sm:$0xf] %vm511, %v510
        %v513 = vld [vmem:[#allocation3] sm:$0xf]
        %v514 = vld [vmem:[%s330] sm:$0xf]
        %v515 = vmul.f32 %v514, %v391
        %v516 = vadd.f32 %v513, %v515
        %vm517 = vcmask 60416
        %518 = vst.msk [vmem:[#allocation3] sm:$0xf] %vm517, %v516
        %p519 = scmp.eq.s32.totalorder %s28, 1
        // Predicated region
        $region65: #{tpu_custom_call.1} parent=39 // pred_check
          %p520 = pneg %p519
        $region66: #{tpu_custom_call.1} parent=39 // pred_check_branch
          %522 = sbr.rel (%p520) target = $region68
        $region67: #{tpu_custom_call.1} parent=39 // pred_region
          %v523 = vld [vmem:[#allocation4] sm:$0xff]
          %v524 = vld [vmem:[#allocation4 + $0x8] sm:$0xff]
          %v525 = vld [vmem:[#allocation4 + $0x10] sm:$0xff]
          %v526 = vld [vmem:[#allocation4 + $0x18] sm:$0xff]
          %v527 = vld [vmem:[#allocation3] sm:$0xf]
          %v528 = vlaneseq
          %v529 = vshrl.u32 %v528, 7
          %v530 = vsub.s32 0, %v529
          %v531 = vrot.slane %v527, %v530
          %533 = vbcast.lane.b32.xlu0 %v531, 256
          %v534 = vpop.permute.xlu0 %533
          %v535 = vlaneseq
          %v536 = vshrl.u32 %v535, 7
          %v537 = vsub.s32 1, %v536
          %v538 = vrot.slane %v527, %v537
          %540 = vbcast.lane.b32.xlu0 %v538, 256
          %v541 = vpop.permute.xlu0 %540
          %v542 = vlaneseq
          %v543 = vshrl.u32 %v542, 7
          %v544 = vsub.s32 2, %v543
          %v545 = vrot.slane %v527, %v544
          %547 = vbcast.lane.b32.xlu0 %v545, 256
          %v548 = vpop.permute.xlu0 %547
          %v549 = vlaneseq
          %v550 = vshrl.u32 %v549, 7
          %v551 = vsub.s32 3, %v550
          %v552 = vrot.slane %v527, %v551
          %554 = vbcast.lane.b32.xlu0 %v552, 256
          %v555 = vpop.permute.xlu0 %554
          %v556 = vmul.f32 %v523, %v534
          %v557 = vmul.f32 %v524, %v541
          %v558 = vmul.f32 %v525, %v548
          %v559 = vmul.f32 %v526, %v555
          %v560 = vsel %vm462, %v556, 0.0
          %v561 = vrot.slane %v560, 4
          %v562 = vadd.f32 %v560, %v561
          %v563 = vrot.slane %v562, 2
          %v564 = vadd.f32 %v562, %v563
          %v565 = vrot.slane %v564, 1
          %v566 = vadd.f32 %v564, %v565
          %v567 = vsel %vm462, %v557, 0.0
          %v568 = vrot.slane %v567, 4
          %v569 = vadd.f32 %v567, %v568
          %v570 = vrot.slane %v569, 2
          %v571 = vadd.f32 %v569, %v570
          %v572 = vrot.slane %v571, 1
          %v573 = vadd.f32 %v571, %v572
          %v574 = vsel %vm462, %v558, 0.0
          %v575 = vrot.slane %v574, 4
          %v576 = vadd.f32 %v574, %v575
          %v577 = vrot.slane %v576, 2
          %v578 = vadd.f32 %v576, %v577
          %v579 = vrot.slane %v578, 1
          %v580 = vadd.f32 %v578, %v579
          %v581 = vsel %vm462, %v559, 0.0
          %v582 = vrot.slane %v581, 4
          %v583 = vadd.f32 %v581, %v582
          %v584 = vrot.slane %v583, 2
          %v585 = vadd.f32 %v583, %v584
          %v586 = vrot.slane %v585, 1
          %v587 = vadd.f32 %v585, %v586
          %v588 = vld [vmem:[#allocation2] sm:$0xf]
          %v593 = vsel %vm503, %v573, %v566
          %v594 = vsel %vm505, %v580, %v593
          %v595 = vsel %vm507, %v587, %v594
          %v597 = vadd.f32 %v588, %v595
          %v598 = vmul.f32 %v597, 0.5
          %v599 = vld [vmem:[#allocation11] sm:$0xff]
          %v600 = vld [vmem:[#allocation11 + $0x8] sm:$0xff]
          %v601 = vld [vmem:[#allocation11 + $0x10] sm:$0xff]
          %v602 = vld [vmem:[#allocation11 + $0x18] sm:$0xff]
          %603 = vxpose.xlu0.b32.start [1/16] %v599, 128
          %604 = vxpose.xlu0.b32.cont [2/16] %v600, 128
          %605 = vxpose.xlu0.b32.cont [3/16] %v601, 128
          %606 = vxpose.xlu0.b32.cont [4/16] %v602, 128
          %607 = vxpose.xlu0.b32.cont [5/16] 0.0, 128
          %608 = vxpose.xlu0.b32.cont [6/16] 0.0, 128
          %609 = vxpose.xlu0.b32.cont [7/16] 0.0, 128
          %610 = vxpose.xlu0.b32.cont [8/16] 0.0, 128
          %611 = vxpose.xlu0.b32.cont [9/16] 0.0, 128
          %612 = vxpose.xlu0.b32.cont [10/16] 0.0, 128
          %613 = vxpose.xlu0.b32.cont [11/16] 0.0, 128
          %614 = vxpose.xlu0.b32.cont [12/16] 0.0, 128
          %615 = vxpose.xlu0.b32.cont [13/16] 0.0, 128
          %616 = vxpose.xlu0.b32.cont [14/16] 0.0, 128
          %617 = vxpose.xlu0.b32.cont [15/16] 0.0, 128
          %618 = vxpose.xlu0.b32.end [16/16] 0.0, 128
          %v619 = vpop.trf.xlu0
          %v620 = vpop.trf.xlu0
          %v621 = vpop.trf.xlu0
          %v622 = vpop.trf.xlu0
          %v623 = vpop.trf.xlu0
          %v624 = vpop.trf.xlu0
          %v625 = vpop.trf.xlu0
          %v626 = vpop.trf.xlu0
          %v627 = vpop.trf.xlu0
          %v628 = vpop.trf.xlu0
          %v629 = vpop.trf.xlu0
          %v630 = vpop.trf.xlu0
          %v631 = vpop.trf.xlu0
          %v632 = vpop.trf.xlu0
          %v633 = vpop.trf.xlu0
          %v634 = vpop.trf.xlu0
          %v636 = vsel %vm462, %v619, 0
          %v639 = vsel %vm462, %v620, 0
          %v642 = vsel %vm462, %v621, 0
          %v645 = vsel %vm462, %v622, 0
          %v648 = vsel %vm462, %v598, 0
          %650 = vmatprep.subr.mxu0 0.0
          %651 = vmatpush1.xpose.msra.mxu0 0.0
          %652 = vmatprep.subr.mxu0 0.0
          %653 = vmatpush1.xpose.msra.mxu0 0.0
          %654 = vmatprep.subr.mxu0 0.0
          %655 = vmatpush1.xpose.msra.mxu0 0.0
          %656 = vmatprep.subr.mxu0 0.0
          %657 = vmatpush1.xpose.msra.mxu0 0.0
          %658 = vmatprep.subr.mxu0 0.0
          %659 = vmatpush1.xpose.msra.mxu0 0.0
          %660 = vmatprep.subr.mxu0 0.0
          %661 = vmatpush1.xpose.msra.mxu0 0.0
          %662 = vmatprep.subr.mxu0 0.0
          %663 = vmatpush1.xpose.msra.mxu0 0.0
          %664 = vmatprep.subr.mxu0 0.0
          %665 = vmatpush1.xpose.msra.mxu0 0.0
          %666 = vmatprep.subr.mxu0 0.0
          %667 = vmatpush1.xpose.msra.mxu0 0.0
          %668 = vmatprep.subr.mxu0 0.0
          %669 = vmatpush1.xpose.msra.mxu0 0.0
          %670 = vmatprep.subr.mxu0 0.0
          %671 = vmatpush1.xpose.msra.mxu0 0.0
          %672 = vmatprep.subr.mxu0 0.0
          %673 = vmatpush1.xpose.msra.mxu0 0.0
          %674 = vmatprep.subr.mxu0 0.0
          %675 = vmatpush1.xpose.msra.mxu0 0.0
          %676 = vmatprep.subr.mxu0 0.0
          %677 = vmatpush1.xpose.msra.mxu0 0.0
          %678 = vmatprep.subr.mxu0 0.0
          %679 = vmatpush1.xpose.msra.mxu0 0.0
          %680 = vmatprep.subr.mxu0 0.0
          %681 = vmatpush1.xpose.msra.mxu0 %v648
          %682 = vmatprep.subr.mxu0 0.0
          %683 = vmatpush2.xpose.msra.mxu0 0.0
          %684 = vmatprep.subr.mxu0 0.0
          %685 = vmatpush2.xpose.msra.mxu0 0.0
          %686 = vmatprep.subr.mxu0 0.0
          %687 = vmatpush2.xpose.msra.mxu0 0.0
          %688 = vmatprep.subr.mxu0 0.0
          %689 = vmatpush2.xpose.msra.mxu0 0.0
          %690 = vmatprep.subr.mxu0 0.0
          %691 = vmatpush2.xpose.msra.mxu0 0.0
          %692 = vmatprep.subr.mxu0 0.0
          %693 = vmatpush2.xpose.msra.mxu0 0.0
          %694 = vmatprep.subr.mxu0 0.0
          %695 = vmatpush2.xpose.msra.mxu0 0.0
          %696 = vmatprep.subr.mxu0 0.0
          %697 = vmatpush2.xpose.msra.mxu0 0.0
          %698 = vmatprep.subr.mxu0 0.0
          %699 = vmatpush2.xpose.msra.mxu0 0.0
          %700 = vmatprep.subr.mxu0 0.0
          %701 = vmatpush2.xpose.msra.mxu0 0.0
          %702 = vmatprep.subr.mxu0 0.0
          %703 = vmatpush2.xpose.msra.mxu0 0.0
          %704 = vmatprep.subr.mxu0 0.0
          %705 = vmatpush2.xpose.msra.mxu0 0.0
          %706 = vmatprep.subr.mxu0 0.0
          %707 = vmatpush2.xpose.msra.mxu0 0.0
          %708 = vmatprep.subr.mxu0 0.0
          %709 = vmatpush2.xpose.msra.mxu0 0.0
          %710 = vmatprep.subr.mxu0 0.0
          %711 = vmatpush2.xpose.msra.mxu0 0.0
          %712 = vmatprep.subr.mxu0 0.0
          %713 = vmatpush2.xpose.msra.mxu0 0.0
          %714 = vmatprep.mubr.f32.mxu0 0.0
          %715 = vmatmul.mubr.f32.gmra.mxu0 %v636
          %v716 = vpop.f32.mrf.mxu0
          %v717 = vadd.f32 0.0, %v716
          %v718 = vpop.f32.mrf.mxu0
          %719 = vmatprep.mubr.f32.mxu0 0.0
          %720 = vmatmul.mubr.f32.gmra.mxu0 %v639
          %v721 = vpop.f32.mrf.mxu0
          %v722 = vadd.f32 0.0, %v721
          %v723 = vpop.f32.mrf.mxu0
          %724 = vmatprep.mubr.f32.mxu0 0.0
          %725 = vmatmul.mubr.f32.gmra.mxu0 %v642
          %v726 = vpop.f32.mrf.mxu0
          %v727 = vadd.f32 0.0, %v726
          %v728 = vpop.f32.mrf.mxu0
          %729 = vmatprep.mubr.f32.mxu0 0.0
          %730 = vmatmul.mubr.f32.gmra.mxu0 %v645
          %v731 = vpop.f32.mrf.mxu0
          %v732 = vadd.f32 0.0, %v731
          %v733 = vpop.f32.mrf.mxu0
          %734 = vdwg.mxu0
          %v735 = vmul.f32 %v717, %v717
          %v736 = vmul.f32 %v722, %v722
          %v737 = vmul.f32 %v727, %v727
          %v738 = vmul.f32 %v732, %v732
          %vm739 = vcmask 31744
          %v740 = vsel %vm739, %v735, 0.0
          %v741 = vsel %vm739, %v736, 0.0
          %v742 = vadd.f32 %v740, %v741
          %v743 = vsel %vm739, %v737, 0.0
          %v744 = vadd.f32 %v742, %v743
          %v745 = vsel %vm739, %v738, 0.0
          %v746 = vadd.f32 %v744, %v745
          %v747 = vrot.slane %v746, 4
          %v748 = vadd.f32 %v746, %v747
          %v749 = vrot.slane %v748, 2
          %v750 = vadd.f32 %v748, %v749
          %v751 = vrot.slane %v750, 1
          %v752 = vadd.f32 %v750, %v751
          %v753 = vmax.f32 %v752, 1e-24
          %v754 = vrsqrt.pop %v753
          %v755 = vmul.f32 %v717, %v754
          %v756 = vmul.f32 %v722, %v754
          %v757 = vmul.f32 %v727, %v754
          %v758 = vmul.f32 %v732, %v754
          %v759 = vpack.c.bf16 %v756, %v755
          %v760 = vpack.c.bf16 %v758, %v757
          %v763 = vunpack.c.l.b16 %v759
          %v764 = vunpack.c.h.b16 %v759
          %v765 = vunpack.c.l.b16 %v760
          %v766 = vunpack.c.h.b16 %v760
          %v767 = vpack.c.b16 %v763, %v763
          %v768 = vpack.c.b16 %v764, %v764
          %v769 = vpack.c.b16 %v765, %v765
          %v770 = vpack.c.b16 %v766, %v766
          %vm775 = vcmask 27648
          %776 = vst.msk [vmem:[%s375] sm:$0xf] %vm775, %v767
          %777 = vst.msk [vmem:[%s375 + $0x4] sm:$0xf] %vm775, %v768
          %778 = vst.msk [vmem:[%s375 + $0x8] sm:$0xf] %vm775, %v769
          %779 = vst.msk [vmem:[%s375 + $0xc] sm:$0xf] %vm775, %v770
        $region68: #{tpu_custom_call.1} parent=39 // pred_fallthru
          _
        %p780 = scmp.lt.s32.totalorder %s27, 0
        %s781 = scalar_select %p780, %s27, 0
        %s782 = smul.addr %s781, 4
        %s783 = scalar_lea.vmem %s5, %s782
        // Predicated region
        $region69: #{tpu_custom_call.1} parent=39 // pred_check
          %p784 = pneg %p184
        $region70: #{tpu_custom_call.1} parent=39 // pred_check_branch
          %786 = sbr.rel (%p784) target = $region72
        $region71: #{tpu_custom_call.1} parent=39 // pred_region
          _
        $region72: #{tpu_custom_call.1} parent=39 // pred_fallthru
          _
        // Predicated region
        $region73: #{tpu_custom_call.1} parent=39 // pred_check
          %p787 = pneg %p184
        $region74: #{tpu_custom_call.1} parent=39 // pred_check_branch
          %789 = sbr.rel (%p787) target = $region76
        $region75: #{tpu_custom_call.1} parent=39 // pred_region
          %p790 = scmp.lt.s32.totalorder %s27, 0
          %s791 = scalar_select %p790, %s27, 0
          %s792 = smul.addr %s791, 4
          %s793 = scalar_lea.vmem %s5, %s792
        $region76: #{tpu_custom_call.1} parent=39 // pred_fallthru
          _
      $region40: #{tpu_custom_call.1} parent=5 // pred_fallthru
        _
      %p794 = scmp.le.s32.totalorder 2, %s18
      // Predicated region
      $region77: #{tpu_custom_call.1} parent=5 // pred_check
        %p795 = pneg %p794
      $region78: #{tpu_custom_call.1} parent=5 // pred_check_branch
        %797 = sbr.rel (%p795) target = $region80
      $region79: #{tpu_custom_call.1} parent=5 // pred_region
        %s798 = ssub.s32 %s18, 2
      $region80: #{tpu_custom_call.1} parent=5 // pred_fallthru
        _
    $region6: #{tpu_custom_call.1} parent=1 // loop_footer
      %s22 = sadd.s32 1, %s18
    $region7: #{tpu_custom_call.1} parent=1 // loop_footer_branch
      %17 = sbr.rel target = $region3
    $region8: #{tpu_custom_call.1} parent=1 // loop_exit
      _
    %799 = vsyncpa [#allocation5], 1
    %s800 = scalar_lea.sflag [#allocation5], 1
    %801 = vsyncpa %s800, 1
    %802 = vsyncpa [#allocation7], 1
    %s803 = scalar_lea.sflag [#allocation7], 1
    %804 = vsyncpa %s803, 1
    %805 = vsyncpa [#allocation10], 1
    %s806 = scalar_lea.sflag [#allocation10], 1
    %807 = vsyncpa %s806, 1

</llo_original>
